<compile_context>
chip_gen: v7x
topology: tpu7x:2x2x1
jax: 0.10.0
libtpu: 0.0.40
codegen_flags: <defaults>
</compile_context>

<pallas_src>
import math

import jax
import jax.numpy as jnp
from jax.experimental import pallas as pl
from jax.experimental.pallas import tpu as pltpu


def _round_up(n: int, m: int) -> int:
    return ((n + m - 1) // m) * m


def _make_kernel(g: int, f: int):
    """Kernel for lane-packed rows: x tile is (TB, g*f); g rows per packed row."""

    def kernel(x_ref, w_ref, b_ref, o_ref):
        # x_ref: (TB, g*f) f32 VMEM (lane-packed rows)
        # w_ref: (1, g*f)  f32 VMEM (g copies of the weight row, resident)
        # b_ref: (1,)      f32 SMEM (scalar bias)
        # o_ref: (TB, g)   f32 VMEM
        prod = x_ref[...] * w_ref[...]          # VPU multiply, row-broadcast weight
        b = b_ref[0]
        for j in range(g):                      # static unroll, g <= 16
            zj = jnp.sum(prod[:, j * f:(j + 1) * f], axis=-1, keepdims=True) + b
            o_ref[:, j:j + 1] = jax.nn.sigmoid(zj).astype(o_ref.dtype)

    return kernel


def classification_model_forward(x, weight, bias, *, tile_budget_bytes=4 * 1024 * 1024):
    """Pallas forward pass of sigmoid(x @ weight.T + bias).

    Args:
      x:      (B, F) float32
      weight: (1, F) float32  (PyTorch nn.Linear layout — used as-is)
      bias:   (1,)   float32
      tile_budget_bytes: VMEM budget for ONE x buffer (padded), default 4 MiB.
    Returns:
      (B, 1) float32
    """
    B, F = x.shape
    assert weight.shape == (1, F)

    x = x.astype(jnp.float32)
    weight = weight.astype(jnp.float32)
    bias = bias.reshape((1,)).astype(jnp.float32)

    # ---- lane packing: fold g rows into the lane axis when F < 128 ----------
    g = 1
    if F < 128 and 128 % F == 0 and B > 1:
        g = min(math.gcd(128 // F, B), 16)   # power of two, divides B
    Bp, Fp = B // g, g * F
    x_p = x.reshape(Bp, Fp)                          # free: same row-major layout
    w_p = jnp.tile(weight, (1, g)) if g > 1 else weight   # (1, Fp)

    # ---- batch tile size: budget on padded VMEM bytes, 8-aligned ------------
    row_vmem_bytes = _round_up(Fp, 128) * 4          # lane-padded f32 row
    tb = max(8, (tile_budget_bytes // row_vmem_bytes) // 8 * 8)
    if Bp <= 8:
        tb = Bp                                      # single full-extent block
    else:
        # At least 2 grid tiles when there is enough work (v7x: 2 TensorCores).
        tb = min(tb, _round_up(-(-Bp // 2), 8))
    num_tiles = -(-Bp // tb)

    kernel = _make_kernel(g, F)

    out = pl.pallas_call(
        kernel,
        out_shape=jax.ShapeDtypeStruct((Bp, g), jnp.float32),
        grid=(num_tiles,),
        in_specs=[
            pl.BlockSpec((tb, Fp), lambda i: (i, 0)),            # x batch tile
            pl.BlockSpec((1, Fp), lambda i: (0, 0)),             # weight row (resident)
            pl.BlockSpec(memory_space=pltpu.MemorySpace.SMEM),   # bias scalar
        ],
        out_specs=pl.BlockSpec((tb, g), lambda i: (i, 0)),
        compiler_params=pltpu.CompilerParams(
            # Independent batch tiles -> v7x can shard across both TCs.
            dimension_semantics=("parallel",),
            # Raises v5e's 16 MiB default; leaves headroom on v7x's 64 MiB.
            vmem_limit_bytes=48 * 1024 * 1024,
        ),
        cost_estimate=pl.CostEstimate(
            flops=2 * B * F,
            transcendentals=B,
            bytes_accessed=B * F * 4 + F * 4 + B * 4,
        ),
    )(x_p, w_p, bias)

    # (Bp, g) row-major == original row order; free reshape back to (B, 1).
    return out.reshape(B, 1)


if __name__ == "__main__":
    key = jax.random.PRNGKey(0)
    kx, kw, kb = jax.random.split(key, 3)

    batch = 8
    input_size = 32

    # Deterministic synthetic parameters (mimic nn.Linear(input_size, 1)).
    bound = 1.0 / (input_size ** 0.5)
    weight = jax.random.uniform(kw, (1, input_size), jnp.float32, -bound, bound)
    bias = jax.random.uniform(kb, (1,), jnp.float32, -bound, bound)

    x = jax.random.normal(kx, (batch, input_size), jnp.float32)

    out = classification_model_forward(x, weight, bias)
    out = jax.block_until_ready(out)

    # Reference in plain JAX (full-precision dot so it matches the f32 VPU path).
    ref = jax.nn.sigmoid(
        jnp.dot(x, weight.T, precision=jax.lax.Precision.HIGHEST) + bias)
    assert out.shape == (batch, 1)
    assert jnp.allclose(out, ref, atol=1e-5), "mismatch vs reference"

    print("KERNEL_OK")
</pallas_src>

<mosaic_0001>
module attributes {stable_mosaic.version = 11 : i64} {
  func.func @kernel(%arg0: i32, %arg1: memref<2x128xf32, #tpu.memory_space<vmem>>, %arg2: memref<1x128xf32, #tpu.memory_space<vmem>>, %arg3: memref<1xf32, #tpu.memory_space<smem>>, %arg4: memref<2x4xf32, #tpu.memory_space<vmem>>) attributes {dimension_semantics = [#tpu.dimension_semantics<parallel>], iteration_bounds = array<i64: 1>, scalar_prefetch = 0 : i64, scratch_operands = 0 : i64, tpu.core_type = #tpu.core_type<tc>, window_params = [{transform_indices = @transform_0, window_bounds = array<i64: 2, 128>}, {pipeline_mode = #tpu.pipeline_mode<synchronous>, transform_indices = @transform_1, window_bounds = array<i64: 1, 128>}, {transform_indices = @transform_2, window_bounds = array<i64: 1>}, {transform_indices = @transform_3, window_bounds = array<i64: 2, 4>}]} {
    %c0 = arith.constant 0 : index
    %c0_0 = arith.constant 0 : index
    %0 = vector.load %arg1[%c0, %c0_0] : memref<2x128xf32, #tpu.memory_space<vmem>>, vector<2x128xf32>
    %c0_1 = arith.constant 0 : index
    %c0_2 = arith.constant 0 : index
    %1 = vector.load %arg2[%c0_1, %c0_2] : memref<1x128xf32, #tpu.memory_space<vmem>>, vector<1x128xf32>
    %2 = vector.broadcast %1 : vector<1x128xf32> to vector<2x128xf32>
    %3 = arith.mulf %0, %2 : vector<2x128xf32>
    %c0_3 = arith.constant 0 : index
    %4 = memref.load %arg3[%c0_3] : memref<1xf32, #tpu.memory_space<smem>>
    %5 = vector.extract_strided_slice %3 {offsets = [0, 0], sizes = [2, 32], strides = [1, 1]} : vector<2x128xf32> to vector<2x32xf32>
    %cst = arith.constant dense<0.000000e+00> : vector<2xf32>
    %6 = vector.multi_reduction <add>, %5, %cst [1] : vector<2x32xf32> to vector<2xf32>
    %7 = vector.shape_cast %6 : vector<2xf32> to vector<2x1xf32>
    %8 = vector.broadcast %4 : f32 to vector<2x1xf32>
    %9 = arith.addf %7, %8 : vector<2x1xf32>
    %10 = arith.negf %9 : vector<2x1xf32>
    %11 = math.exp %10 : vector<2x1xf32>
    %cst_4 = arith.constant 1.000000e+00 : f32
    %12 = vector.broadcast %cst_4 : f32 to vector<2x1xf32>
    %13 = arith.addf %12, %11 : vector<2x1xf32>
    %14 = arith.divf %12, %13 : vector<2x1xf32>
    %c0_5 = arith.constant 0 : index
    %c0_6 = arith.constant 0 : index
    %15 = vector.load %arg4[%c0_5, %c0_6] : memref<2x4xf32, #tpu.memory_space<vmem>>, vector<2x1xf32>
    tpu.vector_store %arg4[%c0_5, %c0_6], %14 {strides = array<i32>} : memref<2x4xf32, #tpu.memory_space<vmem>>, vector<2x1xf32>,
    %16 = vector.extract_strided_slice %3 {offsets = [0, 32], sizes = [2, 32], strides = [1, 1]} : vector<2x128xf32> to vector<2x32xf32>
    %cst_7 = arith.constant dense<0.000000e+00> : vector<2xf32>
    %17 = vector.multi_reduction <add>, %16, %cst_7 [1] : vector<2x32xf32> to vector<2xf32>
    %18 = vector.shape_cast %17 : vector<2xf32> to vector<2x1xf32>
    %19 = vector.broadcast %4 : f32 to vector<2x1xf32>
    %20 = arith.addf %18, %19 : vector<2x1xf32>
    %21 = arith.negf %20 : vector<2x1xf32>
    %22 = math.exp %21 : vector<2x1xf32>
    %cst_8 = arith.constant 1.000000e+00 : f32
    %23 = vector.broadcast %cst_8 : f32 to vector<2x1xf32>
    %24 = arith.addf %23, %22 : vector<2x1xf32>
    %25 = arith.divf %23, %24 : vector<2x1xf32>
    %c0_9 = arith.constant 0 : index
    %c1 = arith.constant 1 : index
    %26 = vector.load %arg4[%c0_9, %c1] : memref<2x4xf32, #tpu.memory_space<vmem>>, vector<2x1xf32>
    tpu.vector_store %arg4[%c0_9, %c1], %25 {strides = array<i32>} : memref<2x4xf32, #tpu.memory_space<vmem>>, vector<2x1xf32>,
    %27 = vector.extract_strided_slice %3 {offsets = [0, 64], sizes = [2, 32], strides = [1, 1]} : vector<2x128xf32> to vector<2x32xf32>
    %cst_10 = arith.constant dense<0.000000e+00> : vector<2xf32>
    %28 = vector.multi_reduction <add>, %27, %cst_10 [1] : vector<2x32xf32> to vector<2xf32>
    %29 = vector.shape_cast %28 : vector<2xf32> to vector<2x1xf32>
    %30 = vector.broadcast %4 : f32 to vector<2x1xf32>
    %31 = arith.addf %29, %30 : vector<2x1xf32>
    %32 = arith.negf %31 : vector<2x1xf32>
    %33 = math.exp %32 : vector<2x1xf32>
    %cst_11 = arith.constant 1.000000e+00 : f32
    %34 = vector.broadcast %cst_11 : f32 to vector<2x1xf32>
    %35 = arith.addf %34, %33 : vector<2x1xf32>
    %36 = arith.divf %34, %35 : vector<2x1xf32>
    %c0_12 = arith.constant 0 : index
    %c2 = arith.constant 2 : index
    %37 = vector.load %arg4[%c0_12, %c2] : memref<2x4xf32, #tpu.memory_space<vmem>>, vector<2x1xf32>
    tpu.vector_store %arg4[%c0_12, %c2], %36 {strides = array<i32>} : memref<2x4xf32, #tpu.memory_space<vmem>>, vector<2x1xf32>,
    %38 = vector.extract_strided_slice %3 {offsets = [0, 96], sizes = [2, 32], strides = [1, 1]} : vector<2x128xf32> to vector<2x32xf32>
    %cst_13 = arith.constant dense<0.000000e+00> : vector<2xf32>
    %39 = vector.multi_reduction <add>, %38, %cst_13 [1] : vector<2x32xf32> to vector<2xf32>
    %40 = vector.shape_cast %39 : vector<2xf32> to vector<2x1xf32>
    %41 = vector.broadcast %4 : f32 to vector<2x1xf32>
    %42 = arith.addf %40, %41 : vector<2x1xf32>
    %43 = arith.negf %42 : vector<2x1xf32>
    %44 = math.exp %43 : vector<2x1xf32>
    %cst_14 = arith.constant 1.000000e+00 : f32
    %45 = vector.broadcast %cst_14 : f32 to vector<2x1xf32>
    %46 = arith.addf %45, %44 : vector<2x1xf32>
    %47 = arith.divf %45, %46 : vector<2x1xf32>
    %c0_15 = arith.constant 0 : index
    %c3 = arith.constant 3 : index
    %48 = vector.load %arg4[%c0_15, %c3] : memref<2x4xf32, #tpu.memory_space<vmem>>, vector<2x1xf32>
    tpu.vector_store %arg4[%c0_15, %c3], %47 {strides = array<i32>} : memref<2x4xf32, #tpu.memory_space<vmem>>, vector<2x1xf32>,
    return
  }
  func.func @transform_0(%arg0: i32) -> (i32, i32) {
    %c0_i32 = arith.constant 0 : i32
    %c0_i32_0 = arith.constant 0 : i32
    return %arg0, %c0_i32 : i32, i32
  }
  func.func @transform_1(%arg0: i32) -> (i32, i32) {
    %c0_i32 = arith.constant 0 : i32
    %c0_i32_0 = arith.constant 0 : i32
    %c0_i32_1 = arith.constant 0 : i32
    return %c0_i32, %c0_i32_0 : i32, i32
  }
  func.func @transform_2(%arg0: i32) -> i32 {
    %c0_i32 = arith.constant 0 : i32
    %c0_i32_0 = arith.constant 0 : i32
    return %c0_i32 : i32
  }
  func.func @transform_3(%arg0: i32) -> (i32, i32) {
    %c0_i32 = arith.constant 0 : i32
    %c0_i32_0 = arith.constant 0 : i32
    return %arg0, %c0_i32 : i32, i32
  }
}

</mosaic_0001>

<llo_original>
// kernel: tpu_custom_call.1
$region0: #{tpu_custom_call.1}
  #allocation0 [shape = 'u32[]', space=smem, size = 0x4, offset = 0x4, fixed_abs, tag = 'smem constant byte address 0x4 - core index']
  #allocation1 [shape = 'u32[144,128]{1,0:T(1,128)}', space=vmem, size = 0x12000, scoped, tag = 'internal scratch']
  #allocation2 [shape = 'f32[1]{0:T(128)S(6)}', space=smem, size = 0x200, scoped, tag = 'scoped memory for tpu_custom_call.1']
  %s0 = inlined_call_operand.vmem [shape: f32[2,128], index: 0, kind: input, shape index: {}]
  %s1 = inlined_call_operand.vmem [shape: f32[1,128], index: 1, kind: input, shape index: {}]
  %s2 = inlined_call_operand.<no memory space> [shape: f32[1], index: 2, kind: input, shape index: {}]
  %s3 = inlined_call_operand.hbm [shape: f32[2,4], index: 3, kind: output, shape index: {}]
  %s4 = sld [smem:[#allocation0]]
  $region22: #{tpu_custom_call.1} parent=0
    _
  %s6 = ssub.s32 1, %s4
  %s7 = scalar_select 0, %s6, %s4
  %8 = sst [smem:[#allocation2]] %s2
  $region1: #{tpu_custom_call.1} parent=0
    #allocation3 [shape = 'u8[1024]{0}', space=vmem, size = 0x400, scoped, tag = 'output window, operand 0, single buffered']
    #allocation4 [shape = 's32[1]{0}', space=sflag, size = 0x4, scoped, tag = 'scoped memory for tpu_custom_call.1']
    %9 = vsyncpa [#allocation4], 0
    // Predicated region
    $region2: #{tpu_custom_call.1} parent=1 // pred_check
      _
    $region3: #{tpu_custom_call.1} parent=1 // pred_check_branch
      %11 = sbr.rel (0) target = $region5
    $region4: #{tpu_custom_call.1} parent=1 // pred_region
      _
    $region5: #{tpu_custom_call.1} parent=1 // pred_fallthru
      _
    // Predicated region
    $region6: #{tpu_custom_call.1} parent=1 // pred_check
      _
    $region7: #{tpu_custom_call.1} parent=1 // pred_check_branch
      %13 = sbr.rel (0) target = $region9
    $region8: #{tpu_custom_call.1} parent=1 // pred_region
      _
    $region9: #{tpu_custom_call.1} parent=1 // pred_fallthru
      _
    // Predicated region
    $region10: #{tpu_custom_call.1} parent=1 // pred_check
      _
    $region11: #{tpu_custom_call.1} parent=1 // pred_check_branch
      %15 = sbr.rel (0) target = $region13
    $region12: #{tpu_custom_call.1} parent=1 // pred_region
      _
    $region13: #{tpu_custom_call.1} parent=1 // pred_fallthru
      _
    %v16 = vld [vmem:[%s0] sm:$0x3]
    %v17 = vld [vmem:[%s1] sm:$0x1]
    %v19 = vlaneseq
    %v20 = vshrl.u32 %v19, 7
    %v21 = vsub.s32 0, %v20
    %v22 = vrot.slane %v17, %v21
    %v24 = vmul.f32 %v16, %v22
    %s25 = sld [smem:[#allocation2]]
    %vm26 = vcmask 254976
    %v27 = vsel %vm26, %v24, 0.0
    %28 = vadd.xlane.f32.xlu0 %v27
    %v29 = vpop.xlane.xlu0 %28
    %v30 = vstv %s25
    %v31 = vadd.f32 %v29, %v30
    %v32 = vxor.u32 %v31, 2147483648
    %v33 = vmul.f32 %v32, 1.442695
    %v34 = vpow.pop %v33
    %v35 = vadd.f32 %v34, 1.0
    %v36 = vrcp.pop %v35
    %v37 = vmul.f32 1.0, %v36
    %vm38 = vcmask 1024
    %39 = vst.msk [vmem:[#allocation3] sm:$0x3] %vm38, %v37
    %41 = vrot.lane.b32.xlu0 %v24, 96
    %v42 = vpop.permute.xlu0 %41
    %v44 = vsel %vm26, %v42, 0.0
    %45 = vadd.xlane.f32.xlu0 %v44
    %v46 = vpop.xlane.xlu0 %45
    %v47 = vadd.f32 %v46, %v30
    %v48 = vxor.u32 %v47, 2147483648
    %v49 = vmul.f32 %v48, 1.442695
    %v50 = vpow.pop %v49
    %v51 = vadd.f32 %v50, 1.0
    %v52 = vrcp.pop %v51
    %v53 = vmul.f32 1.0, %v52
    %vm54 = vcmask 9224
    %55 = vst.msk [vmem:[#allocation3] sm:$0x3] %vm54, %v53
    %56 = vrot.lane.b32.xlu0 %v24, 64
    %v57 = vpop.permute.xlu0 %56
    %v59 = vsel %vm26, %v57, 0.0
    %60 = vadd.xlane.f32.xlu0 %v59
    %v61 = vpop.xlane.xlu0 %60
    %v62 = vadd.f32 %v61, %v30
    %v63 = vxor.u32 %v62, 2147483648
    %v64 = vmul.f32 %v63, 1.442695
    %v65 = vpow.pop %v64
    %v66 = vadd.f32 %v65, 1.0
    %v67 = vrcp.pop %v66
    %v68 = vmul.f32 1.0, %v67
    %vm69 = vcmask 17424
    %70 = vst.msk [vmem:[#allocation3] sm:$0x3] %vm69, %v68
    %71 = vrot.lane.b32.xlu0 %v24, 32
    %v72 = vpop.permute.xlu0 %71
    %v74 = vsel %vm26, %v72, 0.0
    %75 = vadd.xlane.f32.xlu0 %v74
    %v76 = vpop.xlane.xlu0 %75
    %v77 = vadd.f32 %v76, %v30
    %v78 = vxor.u32 %v77, 2147483648
    %v79 = vmul.f32 %v78, 1.442695
    %v80 = vpow.pop %v79
    %v81 = vadd.f32 %v80, 1.0
    %v82 = vrcp.pop %v81
    %v83 = vmul.f32 1.0, %v82
    %vm84 = vcmask 25624
    %85 = vst.msk [vmem:[#allocation3] sm:$0x3] %vm84, %v83
    // Predicated region
    $region14: #{tpu_custom_call.1} parent=1 // pred_check
      _
    $region15: #{tpu_custom_call.1} parent=1 // pred_check_branch
      %87 = sbr.rel (0) target = $region17
    $region16: #{tpu_custom_call.1} parent=1 // pred_region
      %s89 = ssub.s32 32, 32
      %90 = vsyncadd [#allocation4], %s89
      %s92 = sshll.u32 [#allocation3], 4
      %s93 = int_to_ptr.vmem [resolvable:$true] %s92
      %95 = dma.vmem_to_hbm [thread:$0]  %s93, 32, %s3, [#allocation4]
    $region17: #{tpu_custom_call.1} parent=1 // pred_fallthru
      _
    // Predicated region
    $region18: #{tpu_custom_call.1} parent=1 // pred_check
      _
    $region19: #{tpu_custom_call.1} parent=1 // pred_check_branch
      %97 = sbr.rel (0) target = $region21
    $region20: #{tpu_custom_call.1} parent=1 // pred_region
      %98 = dma.done [#allocation4], 32
    $region21: #{tpu_custom_call.1} parent=1 // pred_fallthru
      _
    %99 = vsyncpa [#allocation4], 1

</llo_original>
